<compile_context>
chip_gen: v5e
topology: v5e:2x2
jax: 0.10.0
libtpu: 0.0.40
codegen_flags: <defaults>
</compile_context>

<pallas_src>
import functools

import jax
import jax.numpy as jnp
from jax import lax
from jax.experimental import pallas as pl
from jax.experimental.pallas import tpu as pltpu


def _round_up(x, m):
    return ((x + m - 1) // m) * m


# ----------------------------- Pallas kernel --------------------------------
def _similarity_kernel(p_ref, psq_ref, x_ref, out_ref, *, inv_norm, epsilon):
    # p_ref:   (P_pad, K)   flattened prototypes (grid-invariant)
    # psq_ref: (P_pad, 1)   precomputed |p|^2 per prototype (hoisted)
    # x_ref:   (K, TS)      patch tile: K on sublanes, spatial on lanes (dense)
    # out_ref: (P_pad, TS)  lane-dense output tile
    x = x_ref[...]                                               # (K, TS)
    p = p_ref[...]                                               # (P_pad, K)
    psq = psq_ref[...]                                           # (P_pad, 1)
    xsq = jnp.sum(x * x, axis=0, keepdims=True)                  # (1, TS)  XLU
    xp = jnp.dot(p, x, preferred_element_type=jnp.float32)       # (P_pad, TS) MXU
    dist = jnp.maximum(psq + xsq - 2.0 * xp, 0.0)                # relu(L2^2)
    sim = 1.0 - jnp.sqrt(dist * inv_norm + epsilon)
    out_ref[...] = jnp.clip(sim, 0.0, 1.0)


def _choose_tile_s(s_pad, batch):
    """Largest spatial tile (multiple of 128) that keeps >= 2 grid steps."""
    candidates = [t for t in (2048, 1024, 512, 256, 128) if s_pad % t == 0]
    if not candidates:
        return s_pad
    for t in candidates:
        if batch * (s_pad // t) >= 2:        # keep both v7x TensorCores busy
            return t
    return candidates[0]


def _pallas_similarity_map(x_bks, proto_pk, psq, num_features_total, epsilon):
    """x_bks: (B, K, S_pad) f32, proto_pk: (P_pad, K), psq: (P_pad, 1)
    -> (B, P_pad, S_pad) similarities (transposed, lane-dense)."""
    b, k, s_pad = x_bks.shape
    p_pad, _ = proto_pk.shape
    tile_s = _choose_tile_s(s_pad, b)
    grid = (b, s_pad // tile_s)

    kernel = functools.partial(
        _similarity_kernel,
        inv_norm=1.0 / float(num_features_total),
        epsilon=float(epsilon),
    )
    return pl.pallas_call(
        kernel,
        out_shape=jax.ShapeDtypeStruct((b, p_pad, s_pad), jnp.float32),
        grid=grid,
        in_specs=[
            pl.BlockSpec((p_pad, k), lambda bi, si: (0, 0)),          # prototypes
            pl.BlockSpec((p_pad, 1), lambda bi, si: (0, 0)),          # |p|^2
            pl.BlockSpec((None, k, tile_s), lambda bi, si: (bi, 0, si)),
        ],
        out_specs=pl.BlockSpec((None, p_pad, tile_s),
                               lambda bi, si: (bi, 0, si)),
        compiler_params=pltpu.CompilerParams(
            dimension_semantics=("parallel", "parallel"),
            vmem_limit_bytes=32 * 1024 * 1024,   # fits v7x's 64 MiB / default scoped
        ),
    )(proto_pk, psq, x_bks)


# ------------------------------ JAX glue -------------------------------------
def _im2col_bkhw(xs, w1, h1):
    """xs: (B, C, H, W) -> patches (B, K, Ho, Wo) with K = C*w1*h1 flattened
    like the prototypes' (C, w1, h1) axes. No minor-dim transposes."""
    b, c, h, w = xs.shape
    ho, wo = h - w1 + 1, w - h1 + 1
    cols = []
    for dh in range(w1):
        for dw in range(h1):
            cols.append(xs[:, :, dh:dh + ho, dw:dw + wo])        # (B, C, Ho, Wo)
    patches = jnp.stack(cols, axis=2)                            # (B, C, w1*h1, Ho, Wo)
    patches = patches.reshape(b, c * w1 * h1, ho, wo)            # K = c*(w1*h1)+dh*h1+dw
    return patches, ho, wo


def similarity_forward(xs, prototype_vectors, W, H, epsilon):
    """Pallas implementation of Similarity.forward.

    xs:                 (B, C, Hin, Win)  NCHW, float32
    prototype_vectors:  (P, C, w1, h1)    float32
    returns             (B, P, Hp, Wp)    result of max_pool2d(kernel=(W, H))
    """
    b, c, _, _ = xs.shape
    p, _, w1, h1 = prototype_vectors.shape
    k = c * w1 * h1

    # TODO(synk): for large H/W/C, fuse the im2col unfold into the kernel
    # (fetch (C, tile_h + w1 - 1, W) slabs and accumulate the dot over (dh, dw))
    # to cut HBM traffic by ~w1*h1; materializing patches is fine at these shapes.
    patches, ho, wo = _im2col_bkhw(xs.astype(jnp.float32), w1, h1)   # (B, K, Ho, Wo)
    s = ho * wo
    s_pad = _round_up(s, 128)
    x_bks = patches.reshape(b, k, s)                                 # contiguous
    if s_pad != s:
        x_bks = jnp.pad(x_bks, ((0, 0), (0, 0), (0, s_pad - s)))

    proto_pk = prototype_vectors.reshape(p, k).astype(jnp.float32)   # (P, K)
    p_pad = _round_up(p, 8)
    if p_pad != p:
        proto_pk = jnp.pad(proto_pk, ((0, p_pad - p), (0, 0)))
    psq = jnp.sum(proto_pk * proto_pk, axis=1, keepdims=True)        # (P_pad, 1)

    sim = _pallas_similarity_map(x_bks, proto_pk, psq,
                                 num_features_total=k,
                                 epsilon=epsilon)                    # (B, P_pad, S_pad)

    sim = sim[:, :p, :s].reshape(b, p, ho, wo)                       # (B, P, Ho, Wo)

    # F.max_pool2d(kernel_size=(W, H)): stride = kernel, no padding, floor mode.
    pooled = lax.reduce_window(
        sim, -jnp.inf, lax.max,
        window_dimensions=(1, 1, W, H),
        window_strides=(1, 1, W, H),
        padding="VALID",
    )
    return pooled


# --------------------------- pure-JAX reference -------------------------------
def similarity_reference(xs, prototype_vectors, W, H, epsilon):
    c = xs.shape[1]
    _, _, w1, h1 = prototype_vectors.shape
    dn = ("NCHW", "OIHW", "NCHW")
    ones = jnp.ones_like(prototype_vectors)
    xs_sq = lax.conv_general_dilated(xs ** 2, ones, (1, 1), "VALID",
                                     dimension_numbers=dn)
    ps_sq = jnp.sum(prototype_vectors ** 2, axis=(1, 2, 3)).reshape(-1, 1, 1)
    xconv = lax.conv_general_dilated(xs, prototype_vectors, (1, 1), "VALID",
                                     dimension_numbers=dn)
    dist = jnp.maximum(xs_sq + ps_sq - 2.0 * xconv, 0.0)
    sim = jnp.clip(1.0 - jnp.sqrt(dist / (c * w1 * h1) + epsilon), 0.0, 1.0)
    return lax.reduce_window(sim, -jnp.inf, lax.max,
                             (1, 1, W, H), (1, 1, W, H), "VALID")


# ---------------------------------- main --------------------------------------
if __name__ == "__main__":
    # Module config (small, consistent with Similarity.__init__).
    num_prototypes = 10
    num_features = 4        # C
    w1, h1 = 2, 2
    epsilon = 1e-4

    B, C, Hin, Win = 2, num_features, 16, 16

    key = jax.random.PRNGKey(0)
    k_x, k_p = jax.random.split(key)
    xs = jax.random.normal(k_x, (B, C, Hin, Win), dtype=jnp.float32)
    # torch.rand -> uniform [0, 1)
    prototype_vectors = jax.random.uniform(
        k_p, (num_prototypes, num_features, w1, h1), dtype=jnp.float32)

    # Forward args W, H: the conv-output spatial dims (global max pool).
    Ho, Wo = Hin - w1 + 1, Win - h1 + 1
    W_arg, H_arg = Ho, Wo

    out = similarity_forward(xs, prototype_vectors, W_arg, H_arg, epsilon)
    out = jax.block_until_ready(out)

    ref = similarity_reference(xs, prototype_vectors, W_arg, H_arg, epsilon)
    assert out.shape == (B, num_prototypes, 1, 1), out.shape
    assert jnp.allclose(out, ref, atol=1e-5, rtol=1e-5), (
        float(jnp.max(jnp.abs(out - ref))))

    print("KERNEL_OK")
</pallas_src>

<mosaic_0001>
module attributes {stable_mosaic.version = 11 : i64} {
  func.func @_similarity_kernel(%arg0: i32, %arg1: i32, %arg2: memref<16x16xf32, #tpu.memory_space<vmem>>, %arg3: memref<16x1xf32, #tpu.memory_space<vmem>>, %arg4: memref<1x16x256xf32, #tpu.memory_space<vmem>>, %arg5: memref<1x16x256xf32, #tpu.memory_space<vmem>>) attributes {dimension_semantics = [#tpu.dimension_semantics<parallel>, #tpu.dimension_semantics<parallel>], iteration_bounds = array<i64: 2, 1>, scalar_prefetch = 0 : i64, scratch_operands = 0 : i64, tpu.core_type = #tpu.core_type<tc>, window_params = [{pipeline_mode = #tpu.pipeline_mode<synchronous>, transform_indices = @transform_0, window_bounds = array<i64: 16, 16>}, {pipeline_mode = #tpu.pipeline_mode<synchronous>, transform_indices = @transform_1, window_bounds = array<i64: 16, 1>}, {transform_indices = @transform_2, window_bounds = array<i64: 1, 16, 256>}, {transform_indices = @transform_3, window_bounds = array<i64: 1, 16, 256>}]} {
    %c0 = arith.constant 0 : index
    %c0_0 = arith.constant 0 : index
    %c0_1 = arith.constant 0 : index
    %0 = vector.load %arg4[%c0, %c0_0, %c0_1] : memref<1x16x256xf32, #tpu.memory_space<vmem>>, vector<1x16x256xf32>
    %1 = vector.shape_cast %0 : vector<1x16x256xf32> to vector<16x256xf32>
    %c0_2 = arith.constant 0 : index
    %c0_3 = arith.constant 0 : index
    %2 = vector.load %arg2[%c0_2, %c0_3] : memref<16x16xf32, #tpu.memory_space<vmem>>, vector<16x16xf32>
    %c0_4 = arith.constant 0 : index
    %c0_5 = arith.constant 0 : index
    %3 = vector.load %arg3[%c0_4, %c0_5] : memref<16x1xf32, #tpu.memory_space<vmem>>, vector<16x1xf32>
    %4 = arith.mulf %1, %1 : vector<16x256xf32>
    %cst = arith.constant dense<0.000000e+00> : vector<256xf32>
    %5 = vector.multi_reduction <add>, %4, %cst [0] : vector<16x256xf32> to vector<256xf32>
    %6 = vector.shape_cast %5 : vector<256xf32> to vector<1x256xf32>
    %cst_6 = arith.constant dense<0.000000e+00> : vector<16x256xf32>
    %7 = tpu.matmul %2, %1, %cst_6 {dimension_numbers = #tpu.dot_dimension_numbers<[1], [0], [0], [1], [0, 0, 1, 1], [], []>} : vector<16x16xf32>, vector<16x256xf32>, vector<16x256xf32> -> vector<16x256xf32>
    %8 = vector.broadcast %3 : vector<16x1xf32> to vector<16x256xf32>
    %9 = vector.broadcast %6 : vector<1x256xf32> to vector<16x256xf32>
    %10 = arith.addf %8, %9 : vector<16x256xf32>
    %cst_7 = arith.constant 2.000000e+00 : f32
    %11 = vector.broadcast %cst_7 : f32 to vector<16x256xf32>
    %12 = arith.mulf %11, %7 : vector<16x256xf32>
    %13 = arith.subf %10, %12 : vector<16x256xf32>
    %cst_8 = arith.constant 0.000000e+00 : f32
    %14 = vector.broadcast %cst_8 : f32 to vector<16x256xf32>
    %15 = arith.maximumf %13, %14 : vector<16x256xf32>
    %cst_9 = arith.constant 6.250000e-02 : f32
    %16 = vector.broadcast %cst_9 : f32 to vector<16x256xf32>
    %17 = arith.mulf %15, %16 : vector<16x256xf32>
    %cst_10 = arith.constant 9.99999974E-5 : f32
    %18 = vector.broadcast %cst_10 : f32 to vector<16x256xf32>
    %19 = arith.addf %17, %18 : vector<16x256xf32>
    %20 = math.sqrt %19 : vector<16x256xf32>
    %cst_11 = arith.constant 1.000000e+00 : f32
    %21 = vector.broadcast %cst_11 : f32 to vector<16x256xf32>
    %22 = arith.subf %21, %20 : vector<16x256xf32>
    %cst_12 = arith.constant 0.000000e+00 : f32
    %cst_13 = arith.constant 1.000000e+00 : f32
    %23 = vector.broadcast %cst_12 : f32 to vector<16x256xf32>
    %24 = arith.maximumf %23, %22 : vector<16x256xf32>
    %25 = vector.broadcast %cst_13 : f32 to vector<16x256xf32>
    %26 = arith.minimumf %25, %24 : vector<16x256xf32>
    %c0_14 = arith.constant 0 : index
    %c0_15 = arith.constant 0 : index
    %c0_16 = arith.constant 0 : index
    %27 = vector.load %arg5[%c0_14, %c0_15, %c0_16] : memref<1x16x256xf32, #tpu.memory_space<vmem>>, vector<1x16x256xf32>
    %28 = vector.shape_cast %27 : vector<1x16x256xf32> to vector<16x256xf32>
    %29 = vector.shape_cast %26 : vector<16x256xf32> to vector<1x16x256xf32>
    tpu.vector_store %arg5[%c0_14, %c0_15, %c0_16], %29 {strides = array<i32>} : memref<1x16x256xf32, #tpu.memory_space<vmem>>, vector<1x16x256xf32>,
    return
  }
  func.func @transform_0(%arg0: i32, %arg1: i32) -> (i32, i32) {
    %c0_i32 = arith.constant 0 : i32
    %c0_i32_0 = arith.constant 0 : i32
    %c0_i32_1 = arith.constant 0 : i32
    return %c0_i32, %c0_i32_0 : i32, i32
  }
  func.func @transform_1(%arg0: i32, %arg1: i32) -> (i32, i32) {
    %c0_i32 = arith.constant 0 : i32
    %c0_i32_0 = arith.constant 0 : i32
    %c0_i32_1 = arith.constant 0 : i32
    return %c0_i32, %c0_i32_0 : i32, i32
  }
  func.func @transform_2(%arg0: i32, %arg1: i32) -> (i32, i32, i32) {
    %c0_i32 = arith.constant 0 : i32
    %c0_i32_0 = arith.constant 0 : i32
    return %arg0, %c0_i32, %arg1 : i32, i32, i32
  }
  func.func @transform_3(%arg0: i32, %arg1: i32) -> (i32, i32, i32) {
    %c0_i32 = arith.constant 0 : i32
    %c0_i32_0 = arith.constant 0 : i32
    return %arg0, %c0_i32, %arg1 : i32, i32, i32
  }
}

</mosaic_0001>

<llo_original>
// kernel: tpu_custom_call.1
$region0: #{tpu_custom_call.1}
  #allocation0 [shape = 'u32[]', space=smem, size = 0x4, offset = 0x4, fixed_abs, tag = 'smem constant byte address 0x4 - core index']
  #allocation1 [shape = 'u32[72,128]{1,0:T(1,128)}', space=vmem, size = 0x9000, scoped, tag = 'internal scratch']
  %s0 = inlined_call_operand.vmem [shape: f32[16,16], index: 0, kind: input, shape index: {}]
  %s1 = inlined_call_operand.vmem [shape: f32[16,1], index: 1, kind: input, shape index: {}]
  %s2 = inlined_call_operand.hbm [shape: f32[2,16,256], index: 2, kind: input, shape index: {}]
  %s3 = inlined_call_operand.hbm [shape: f32[2,16,256], index: 3, kind: output, shape index: {}]
  %s4 = sld [smem:[#allocation0]]
  $region49: #{tpu_custom_call.1} parent=0
    _
  %s6 = ssub.s32 1, %s4
  %s7 = scalar_select 0, %s6, %s4
  $region1: #{tpu_custom_call.1} parent=0
    #allocation2 [shape = 'u8[32768]{0}', space=vmem, size = 0x8000, scoped, tag = 'input window, operand 2']
    #allocation3 [shape = 's32[2]{0}', space=sflag, size = 0x8, scoped, tag = 'scoped memory for tpu_custom_call.1']
    #allocation4 [shape = 's32[2]{0}', space=sflag, size = 0x8, scoped, tag = 'scoped memory for tpu_custom_call.1']
    #allocation5 [shape = 'u8[32768]{0}', space=vmem, size = 0x8000, scoped, tag = 'output window, operand 0']
    %8 = vsyncpa [#allocation3], 0
    %s9 = scalar_lea.sflag [#allocation3], 1
    %10 = vsyncpa %s9, 0
    %11 = vsyncpa [#allocation4], 0
    %s12 = scalar_lea.sflag [#allocation4], 1
    %13 = vsyncpa %s12, 0
    loop: start=0, step=1, limit=4
    $region2: #{tpu_custom_call.1} parent=1 // loop_pre_header
      _
    $region3: #{tpu_custom_call.1} parent=1 // loop_header
      %s15 = sphi 0, %s19
      %p16 = scmp.ge.s32.totalorder %s15, 4
      %s22 = sphi 0, %s34
      %s23 = sphi 0, %s30
      %s24 = sphi 0, %s22
      %s25 = sphi 0, %s23
      %s26 = sphi 0, %s24
      %s27 = sphi 0, %s25
      %s35 = sphi 0, %s35
      %s37 = sphi 0, %s35
      %s38 = sphi 0, %s37
      %s52 = sphi 0, %s38
      %s56 = sphi 0, %s56
      %s58 = sphi 0, %s56
      %s59 = sphi 0, %s58
      %s73 = sphi 0, %s59
      %s81 = sphi 0, %s83
      %s84 = sphi 0, %s81
      %s85 = sphi 0, %s84
      %s101 = sphi 0, %s85
      %s109 = sphi 0, %s111
      %s112 = sphi 0, %s109
      %s113 = sphi 0, %s112
      %s129 = sphi 0, %s113
    $region4: #{tpu_custom_call.1} parent=1 // loop_header_branch
      %18 = sbr.rel (%p16) target = $region8
    $region5: #{tpu_custom_call.1} parent=1 // loop_body
      %s20 = ssub.s32 %s15, 1
      %s21 = ssub.s32 %s15, 2
      %s28 = sadd.s32 1, %s23
      %p29 = scmp.ge.s32.totalorder %s28, 1
      %s30 = scalar_select %p29, 0, %s28
      %s31 = sadd.s32 1, %s22
      %s32 = scalar_select %p29, %s31, %s22
      %p33 = scmp.ge.s32.totalorder %s32, 2
      %s34 = scalar_select %p33, 0, %s32
      %s36 = sadd.s32 %s35, 1
      %p39 = scmp.eq.s32.totalorder %s15, 1
      %p40 = scmp.ne.s32.totalorder %s35, %s37
      %p41 = scmp.eq.s32.totalorder %s15, 0
      %p42 = por %p40, %p41
      %p43 = scmp.ne.s32.totalorder %s35, %s37
      %p44 = scmp.eq.s32.totalorder %s20, 1
      %p45 = por %p43, %p44
      %p46 = scmp.ne.s32.totalorder %s37, %s38
      %p47 = scmp.eq.s32.totalorder %s20, 0
      %p48 = por %p46, %p47
      %p49 = scmp.ne.s32.totalorder %s37, %s38
      %p50 = scmp.eq.s32.totalorder %s21, 1
      %p51 = por %p49, %p50
      %p53 = scmp.ne.s32.totalorder %s38, %s52
      %p54 = scmp.eq.s32.totalorder %s21, 0
      %p55 = por %p53, %p54
      %s57 = sadd.s32 %s56, 1
      %p60 = scmp.eq.s32.totalorder %s15, 1
      %p61 = scmp.ne.s32.totalorder %s56, %s58
      %p62 = scmp.eq.s32.totalorder %s15, 0
      %p63 = por %p61, %p62
      %p64 = scmp.ne.s32.totalorder %s56, %s58
      %p65 = scmp.eq.s32.totalorder %s20, 1
      %p66 = por %p64, %p65
      %p67 = scmp.ne.s32.totalorder %s58, %s59
      %p68 = scmp.eq.s32.totalorder %s20, 0
      %p69 = por %p67, %p68
      %p70 = scmp.ne.s32.totalorder %s58, %s59
      %p71 = scmp.eq.s32.totalorder %s21, 1
      %p72 = por %p70, %p71
      %p74 = scmp.ne.s32.totalorder %s59, %s73
      %p75 = scmp.eq.s32.totalorder %s21, 0
      %p76 = por %p74, %p75
      %s77 = ssub.s32 %s22, %s34
      %s78 = ssub.s32 %s23, %s30
      %s79 = sor.u32 %s77, %s78
      %p80 = scmp.eq.s32.totalorder %s79, 0
      %s82 = sadd.s32 %s81, 1
      %s83 = scalar_select %p80, %s81, %s82
      %p86 = pneg %p80
      %p87 = scmp.eq.s32.totalorder %s15, 1
      %p88 = por %p86, %p87
      %p89 = scmp.ne.s32.totalorder %s81, %s84
      %p90 = scmp.eq.s32.totalorder %s15, 0
      %p91 = por %p89, %p90
      %p92 = scmp.ne.s32.totalorder %s81, %s84
      %p93 = scmp.eq.s32.totalorder %s20, 1
      %p94 = por %p92, %p93
      %p95 = scmp.ne.s32.totalorder %s84, %s85
      %p96 = scmp.eq.s32.totalorder %s20, 0
      %p97 = por %p95, %p96
      %p98 = scmp.ne.s32.totalorder %s84, %s85
      %p99 = scmp.eq.s32.totalorder %s21, 1
      %p100 = por %p98, %p99
      %p102 = scmp.ne.s32.totalorder %s85, %s101
      %p103 = scmp.eq.s32.totalorder %s21, 0
      %p104 = por %p102, %p103
      %s105 = ssub.s32 %s22, %s34
      %s106 = ssub.s32 %s23, %s30
      %s107 = sor.u32 %s105, %s106
      %p108 = scmp.eq.s32.totalorder %s107, 0
      %s110 = sadd.s32 %s109, 1
      %s111 = scalar_select %p108, %s109, %s110
      %p114 = pneg %p108
      %p115 = scmp.eq.s32.totalorder %s15, 1
      %p116 = por %p114, %p115
      %p117 = scmp.ne.s32.totalorder %s109, %s112
      %p118 = scmp.eq.s32.totalorder %s15, 0
      %p119 = por %p117, %p118
      %p120 = scmp.ne.s32.totalorder %s109, %s112
      %p121 = scmp.eq.s32.totalorder %s20, 1
      %p122 = por %p120, %p121
      %p123 = scmp.ne.s32.totalorder %s112, %s113
      %p124 = scmp.eq.s32.totalorder %s20, 0
      %p125 = por %p123, %p124
      %p126 = scmp.ne.s32.totalorder %s112, %s113
      %p127 = scmp.eq.s32.totalorder %s21, 1
      %p128 = por %p126, %p127
      %p130 = scmp.ne.s32.totalorder %s113, %s129
      %p131 = scmp.eq.s32.totalorder %s21, 0
      %p132 = por %p130, %p131
      %p133 = scmp.le.s32.totalorder 1, %s15
      %p134 = scmp.lt.s32.totalorder %s15, 3
      %p135 = pnand %p133, %p134
      %p136 = pneg %p135
      // Predicated region
      $region9: #{tpu_custom_call.1} parent=5 // pred_check
        _
      $region10: #{tpu_custom_call.1} parent=5 // pred_check_branch
        %138 = sbr.rel (%p135) target = $region12
      $region11: #{tpu_custom_call.1} parent=5 // pred_region
        %s139 = ssub.s32 %s15, 1
        // Predicated region
        $region13: #{tpu_custom_call.1} parent=11 // pred_check
          %p140 = pneg %p48
        $region14: #{tpu_custom_call.1} parent=11 // pred_check_branch
          %142 = sbr.rel (%p140) target = $region16
        $region15: #{tpu_custom_call.1} parent=11 // pred_region
          _
        $region16: #{tpu_custom_call.1} parent=11 // pred_fallthru
          _
        // Predicated region
        $region17: #{tpu_custom_call.1} parent=11 // pred_check
          %p143 = pneg %p69
        $region18: #{tpu_custom_call.1} parent=11 // pred_check_branch
          %145 = sbr.rel (%p143) target = $region20
        $region19: #{tpu_custom_call.1} parent=11 // pred_region
          _
        $region20: #{tpu_custom_call.1} parent=11 // pred_fallthru
          _
      $region12: #{tpu_custom_call.1} parent=5 // pred_fallthru
        _
      %p146 = scmp.lt.s32.totalorder %s15, 2
      // Predicated region
      $region21: #{tpu_custom_call.1} parent=5 // pred_check
        %p147 = pneg %p146
      $region22: #{tpu_custom_call.1} parent=5 // pred_check_branch
        %149 = sbr.rel (%p147) target = $region24
      $region23: #{tpu_custom_call.1} parent=5 // pred_region
        // Predicated region
        $region25: #{tpu_custom_call.1} parent=23 // pred_check
          %p150 = pneg %p91
        $region26: #{tpu_custom_call.1} parent=23 // pred_check_branch
          %152 = sbr.rel (%p150) target = $region28
        $region27: #{tpu_custom_call.1} parent=23 // pred_region
          %s153 = sand.u32 %s81, 1
          %s154 = scalar_lea.sflag [#allocation3], %s153
          %s155 = sand.u32 %s81, 1
          %s156 = smul.addr %s155, 32
          %s157 = scalar_lea.vmem [#allocation2], %s156
          %s158 = smul.u32 2, %s23
          %160 = vsyncadd %s154, 0
          %s161 = smul.addr %s22, 4
          %s162 = sadd.s32 %s158, %s161
          %s163 = smul.addr %s162, 8
          %s164 = scalar_lea.hbm %s2, %s163
          %s165 = sshll.u32 %s164, 4
          %s166 = int_to_ptr.hbm [resolvable:$true] %s165
          %s167 = sshll.u32 %s157, 4
          %s168 = int_to_ptr.vmem [resolvable:$true] %s167
          %173 = dma.hbm_to_vmem [thread:$0]  %s166, 512, %s168, %s154, 256, 256, 16
        $region28: #{tpu_custom_call.1} parent=23 // pred_fallthru
          _
      $region24: #{tpu_custom_call.1} parent=5 // pred_fallthru
        _
      %p174 = scmp.le.s32.totalorder 1, %s15
      %p175 = scmp.lt.s32.totalorder %s15, 3
      %p176 = pnand %p174, %p175
      %p177 = pneg %p176
      // Predicated region
      $region29: #{tpu_custom_call.1} parent=5 // pred_check
        _
      $region30: #{tpu_custom_call.1} parent=5 // pred_check_branch
        %179 = sbr.rel (%p176) target = $region32
      $region31: #{tpu_custom_call.1} parent=5 // pred_region
        %s180 = ssub.s32 %s15, 1
        %s181 = sand.u32 %s84, 1
        %s182 = scalar_lea.sflag [#allocation3], %s181
        %s183 = sand.u32 %s84, 1
        %s184 = smul.addr %s183, 32
        %s185 = scalar_lea.vmem [#allocation2], %s184
        // Predicated region
        $region33: #{tpu_custom_call.1} parent=31 // pred_check
          %p186 = pneg %p97
        $region34: #{tpu_custom_call.1} parent=31 // pred_check_branch
          %188 = sbr.rel (%p186) target = $region36
        $region35: #{tpu_custom_call.1} parent=31 // pred_region
          %190 = dma.done %s182, 512
        $region36: #{tpu_custom_call.1} parent=31 // pred_fallthru
          _
        %p191 = pneg %p48
        %p192 = pneg %p45
        %p193 = pneg %p69
        %p194 = pneg %p66
        %s195 = sand.u32 %s84, 1
        %s196 = scalar_lea.sflag [#allocation3], %s195
        %s197 = sand.u32 %s84, 1
        %s198 = smul.addr %s197, 32
        %s199 = scalar_lea.vmem [#allocation2], %s198
        %p200 = pneg %p97
        %p201 = pneg %p94
        %p202 = pneg %p125
        %p203 = pneg %p122
        %s204 = sand.u32 %s112, 1
        %s205 = scalar_lea.sflag [#allocation4], %s204
        %s206 = sand.u32 %s112, 1
        %s207 = smul.addr %s206, 32
        %s208 = scalar_lea.vmem [#allocation5], %s207
        %s209 = smul.u32 2, %s25
        %s210 = smul.u32 2, %s25
        %v211 = vld [vmem:[%s185] sm:$0xff]
        %v212 = vld [vmem:[%s185 + $0x8] sm:$0xff]
        %v213 = vld [vmem:[%s185 + $0x10] sm:$0xff]
        %v214 = vld [vmem:[%s185 + $0x18] sm:$0xff]
        %v215 = vld [vmem:[%s0] sm:$0xff]
        %v216 = vld [vmem:[%s0 + $0x8] sm:$0xff]
        %v217 = vld [vmem:[%s1] sm:$0xff]
        %v218 = vld [vmem:[%s1 + $0x8] sm:$0xff]
        %v219 = vmul.f32 %v211, %v211
        %v220 = vmul.f32 %v212, %v212
        %v221 = vmul.f32 %v213, %v213
        %v222 = vmul.f32 %v214, %v214
        %v223 = vadd.f32 %v219, %v221
        %v224 = vrot.slane %v223, 4
        %v225 = vadd.f32 %v223, %v224
        %v226 = vrot.slane %v225, 2
        %v227 = vadd.f32 %v225, %v226
        %v228 = vrot.slane %v227, 1
        %v229 = vadd.f32 %v227, %v228
        %v230 = vadd.f32 %v220, %v222
        %v231 = vrot.slane %v230, 4
        %v232 = vadd.f32 %v230, %v231
        %v233 = vrot.slane %v232, 2
        %v234 = vadd.f32 %v232, %v233
        %v235 = vrot.slane %v234, 1
        %v236 = vadd.f32 %v234, %v235
        %vm237 = vcmask 130048
        %v239 = vsel %vm237, %v215, 0
        %v242 = vsel %vm237, %v216, 0
        %244 = vmatpush.msra.mxu0 0.0
        %245 = vmatpush.msra.mxu0 0.0
        %246 = vmatpush.msra.mxu0 0.0
        %247 = vmatpush.msra.mxu0 0.0
        %248 = vmatpush.msra.mxu0 0.0
        %249 = vmatpush.msra.mxu0 0.0
        %250 = vmatpush.msra.mxu0 0.0
        %251 = vmatpush.msra.mxu0 0.0
        %252 = vmatpush.msra.mxu0 0.0
        %253 = vmatpush.msra.mxu0 0.0
        %254 = vmatpush.msra.mxu0 0.0
        %255 = vmatpush.msra.mxu0 0.0
        %256 = vmatpush.msra.mxu0 0.0
        %257 = vmatpush.msra.mxu0 0.0
        %258 = vmatpush.msra.mxu0 %v213
        %259 = vmatpush.msra.mxu0 %v211
        %260 = vmatmul.f32.gmra.mxu0 %v239
        %v261 = vpop.f32.mrf.mxu0
        %v262 = vadd.f32 0.0, %v261
        %263 = vmatmul.f32.gmra.mxu0 %v242
        %v264 = vpop.f32.mrf.mxu0
        %v265 = vadd.f32 0.0, %v264
        %266 = vdwg.mxu0
        %267 = vmatpush.msra.mxu0 0.0
        %268 = vmatpush.msra.mxu0 0.0
        %269 = vmatpush.msra.mxu0 0.0
        %270 = vmatpush.msra.mxu0 0.0
        %271 = vmatpush.msra.mxu0 0.0
        %272 = vmatpush.msra.mxu0 0.0
        %273 = vmatpush.msra.mxu0 0.0
        %274 = vmatpush.msra.mxu0 0.0
        %275 = vmatpush.msra.mxu0 0.0
        %276 = vmatpush.msra.mxu0 0.0
        %277 = vmatpush.msra.mxu0 0.0
        %278 = vmatpush.msra.mxu0 0.0
        %279 = vmatpush.msra.mxu0 0.0
        %280 = vmatpush.msra.mxu0 0.0
        %281 = vmatpush.msra.mxu0 %v214
        %282 = vmatpush.msra.mxu0 %v212
        %283 = vmatmul.f32.gmra.mxu0 %v239
        %v284 = vpop.f32.mrf.mxu0
        %v285 = vadd.f32 0.0, %v284
        %286 = vmatmul.f32.gmra.mxu0 %v242
        %v287 = vpop.f32.mrf.mxu0
        %v288 = vadd.f32 0.0, %v287
        %289 = vdwg.mxu0
        %291 = vset.pattern.permute.xlu0 0
        %292 = vperm.xlu0 %291, %v217
        %v293 = vpop.permute.xlu0 %292
        %296 = vset.pattern.permute.xlu0 0
        %297 = vperm.xlu0 %296, %v218
        %v298 = vpop.permute.xlu0 %297
        %v300 = vadd.f32 %v293, %v229
        %v301 = vadd.f32 %v293, %v236
        %v302 = vadd.f32 %v298, %v229
        %v303 = vadd.f32 %v298, %v236
        %v304 = vmul.f32 %v262, 2.0
        %v305 = vmul.f32 %v285, 2.0
        %v306 = vmul.f32 %v265, 2.0
        %v307 = vmul.f32 %v288, 2.0
        %v308 = vsub.f32 %v300, %v304
        %v309 = vsub.f32 %v301, %v305
        %v310 = vsub.f32 %v302, %v306
        %v311 = vsub.f32 %v303, %v307
        %v312 = vmax.f32 %v308, 0.0
        %v313 = vmax.f32 %v309, 0.0
        %v314 = vmax.f32 %v310, 0.0
        %v315 = vmax.f32 %v311, 0.0
        %v316 = vmul.f32 %v312, 0.0625
        %v317 = vmul.f32 %v313, 0.0625
        %v318 = vmul.f32 %v314, 0.0625
        %v319 = vmul.f32 %v315, 0.0625
        %v320 = vadd.f32 %v316, 0.0001
        %v321 = vadd.f32 %v317, 0.0001
        %v322 = vadd.f32 %v318, 0.0001
        %v323 = vadd.f32 %v319, 0.0001
        %v324 = vrsqrt.pop %v320
        %v325 = vmul.f32 %v324, %v320
        %v326 = vmul.f32 %v325, %v324
        %v327 = vmul.f32 0.5, %v326
        %v328 = vsub.f32 1.5, %v327
        %v329 = vmul.f32 %v324, %v328
        %v330 = vmul.f32 %v320, %v329
        %vm331 = vcmp.eq.f32.partialorder %v320, inf
        %v332 = vsel %vm331, %v320, %v330
        %vm333 = vcmp.eq.f32.partialorder %v320, 0.0
        %v334 = vand.u32 %v320, 2147483648
        %v335 = vsel %vm333, %v334, %v332
        %v336 = vrsqrt.pop %v321
        %v337 = vmul.f32 %v336, %v321
        %v338 = vmul.f32 %v337, %v336
        %v339 = vmul.f32 0.5, %v338
        %v340 = vsub.f32 1.5, %v339
        %v341 = vmul.f32 %v336, %v340
        %v342 = vmul.f32 %v321, %v341
        %vm343 = vcmp.eq.f32.partialorder %v321, inf
        %v344 = vsel %vm343, %v321, %v342
        %vm345 = vcmp.eq.f32.partialorder %v321, 0.0
        %v346 = vand.u32 %v321, 2147483648
        %v347 = vsel %vm345, %v346, %v344
        %v348 = vrsqrt.pop %v322
        %v349 = vmul.f32 %v348, %v322
        %v350 = vmul.f32 %v349, %v348
        %v351 = vmul.f32 0.5, %v350
        %v352 = vsub.f32 1.5, %v351
        %v353 = vmul.f32 %v348, %v352
        %v354 = vmul.f32 %v322, %v353
        %vm355 = vcmp.eq.f32.partialorder %v322, inf
        %v356 = vsel %vm355, %v322, %v354
        %vm357 = vcmp.eq.f32.partialorder %v322, 0.0
        %v358 = vand.u32 %v322, 2147483648
        %v359 = vsel %vm357, %v358, %v356
        %v360 = vrsqrt.pop %v323
        %v361 = vmul.f32 %v360, %v323
        %v362 = vmul.f32 %v361, %v360
        %v363 = vmul.f32 0.5, %v362
        %v364 = vsub.f32 1.5, %v363
        %v365 = vmul.f32 %v360, %v364
        %v366 = vmul.f32 %v323, %v365
        %vm367 = vcmp.eq.f32.partialorder %v323, inf
        %v368 = vsel %vm367, %v323, %v366
        %vm369 = vcmp.eq.f32.partialorder %v323, 0.0
        %v370 = vand.u32 %v323, 2147483648
        %v371 = vsel %vm369, %v370, %v368
        %v372 = vsub.f32 1.0, %v335
        %v373 = vsub.f32 1.0, %v347
        %v374 = vsub.f32 1.0, %v359
        %v375 = vsub.f32 1.0, %v371
        %v376 = vmax.f32 %v372, 0.0
        %v377 = vmax.f32 %v373, 0.0
        %v378 = vmax.f32 %v374, 0.0
        %v379 = vmax.f32 %v375, 0.0
        %v380 = vmin.f32 %v376, 1.0
        %v381 = vmin.f32 %v377, 1.0
        %v382 = vmin.f32 %v378, 1.0
        %v383 = vmin.f32 %v379, 1.0
        %384 = vst [vmem:[%s208] sm:$0xff] %v380
        %385 = vst [vmem:[%s208 + $0x8] sm:$0xff] %v381
        %386 = vst [vmem:[%s208 + $0x10] sm:$0xff] %v382
        %387 = vst [vmem:[%s208 + $0x18] sm:$0xff] %v383
        %s388 = sand.u32 %s112, 1
        %s389 = scalar_lea.sflag [#allocation4], %s388
        %s390 = sand.u32 %s112, 1
        %s391 = smul.addr %s390, 32
        %s392 = scalar_lea.vmem [#allocation5], %s391
        // Predicated region
        $region37: #{tpu_custom_call.1} parent=31 // pred_check
          %p393 = pneg %p122
        $region38: #{tpu_custom_call.1} parent=31 // pred_check_branch
          %395 = sbr.rel (%p393) target = $region40
        $region39: #{tpu_custom_call.1} parent=31 // pred_region
          %s396 = smul.u32 2, %s25
          %398 = vsyncadd %s389, 0
          %s399 = smul.addr %s24, 4
          %s400 = sadd.s32 %s396, %s399
          %s401 = smul.addr %s400, 8
          %s402 = scalar_lea.hbm %s3, %s401
          %s403 = sshll.u32 %s392, 4
          %s404 = int_to_ptr.vmem [resolvable:$true] %s403
          %s405 = sshll.u32 %s402, 4
          %s406 = int_to_ptr.hbm [resolvable:$true] %s405
          %411 = dma.vmem_to_hbm [thread:$0]  %s404, 512, %s406, %s389, 256, 256, 16
        $region40: #{tpu_custom_call.1} parent=31 // pred_fallthru
          _
      $region32: #{tpu_custom_call.1} parent=5 // pred_fallthru
        _
      %p412 = scmp.le.s32.totalorder 2, %s15
      // Predicated region
      $region41: #{tpu_custom_call.1} parent=5 // pred_check
        %p413 = pneg %p412
      $region42: #{tpu_custom_call.1} parent=5 // pred_check_branch
        %415 = sbr.rel (%p413) target = $region44
      $region43: #{tpu_custom_call.1} parent=5 // pred_region
        %s416 = ssub.s32 %s15, 2
        // Predicated region
        $region45: #{tpu_custom_call.1} parent=43 // pred_check
          %p417 = pneg %p128
        $region46: #{tpu_custom_call.1} parent=43 // pred_check_branch
          %419 = sbr.rel (%p417) target = $region48
        $region47: #{tpu_custom_call.1} parent=43 // pred_region
          %s420 = sand.u32 %s113, 1
          %s421 = scalar_lea.sflag [#allocation4], %s420
          %s422 = sand.u32 %s113, 1
          %s423 = smul.addr %s422, 32
          %s424 = scalar_lea.vmem [#allocation5], %s423
          %426 = dma.done %s421, 512
        $region48: #{tpu_custom_call.1} parent=43 // pred_fallthru
          _
      $region44: #{tpu_custom_call.1} parent=5 // pred_fallthru
        _
    $region6: #{tpu_custom_call.1} parent=1 // loop_footer
      %s19 = sadd.s32 1, %s15
    $region7: #{tpu_custom_call.1} parent=1 // loop_footer_branch
      %14 = sbr.rel target = $region3
    $region8: #{tpu_custom_call.1} parent=1 // loop_exit
      _
    %427 = vsyncpa [#allocation3], 1
    %s428 = scalar_lea.sflag [#allocation3], 1
    %429 = vsyncpa %s428, 1
    %430 = vsyncpa [#allocation4], 1
    %s431 = scalar_lea.sflag [#allocation4], 1
    %432 = vsyncpa %s431, 1

</llo_original>
